<compile_context>
chip_gen: v5e
topology: v5e:2x2
jax: 0.10.0
libtpu: 0.0.40
codegen_flags: <defaults>
</compile_context>

<pallas_src>
import jax
import jax.numpy as jnp
from jax import lax
from jax.experimental import pallas as pl
from jax.experimental.pallas import tpu as pltpu

LEAKY_SLOPE = 0.01   # PyTorch nn.LeakyReLU default
BN_EPS = 1e-5        # PyTorch nn.BatchNorm1d default

LATENT = 128
H1 = 32
H2 = 16
NUM_CLASSES = 2
OUT_PAD = 128        # lane-dense padded head width
TILE_B_CAP = 1024    # max batch-tile rows (amortizes per-grid-step overhead)


def _round_up(x, m):
    return ((x + m - 1) // m) * m


def _cdiv(a, b):
    return -(-a // b)


def _leaky_relu(h):
    return jnp.where(h > 0, h, LEAKY_SLOPE * h)


def _vmem_capacity_bytes():
    try:
        return int(pltpu.get_tpu_info().vmem_capacity_bytes)
    except Exception:
        return 64 << 20   # conservative fallback = v7x per-TC VMEM


def encoder_classifier_kernel(
    x_ref,            # [TILE_B, TK]      f32 flattened input tile (streamed)
    we_ref,           # [TK, 32]          bf16 folded (We @ W1) weight tile
    be_ref,           # [1, 32]           f32 folded bias (be @ W1 + b1)
    w2_ref, b2_ref,   # Linear(32 -> 16), BN1 folded in              (resident)
    w3_ref, b3_ref,   # Linear(16 -> OUT_PAD), BN2 folded, zero-padded past class 2
    out_ref,          # [TILE_B, OUT_PAD] bf16 softmax probs (cols >= NUM_CLASSES are 0)
    acc_ref,          # [TILE_B, 32]      f32 accumulator over the K grid axis
):
    k = pl.program_id(1)

    @pl.when(k == 0)
    def _():
        acc_ref[...] = jnp.zeros_like(acc_ref)

    # ---- fused encoder+Linear1 partial product (bf16 inputs, f32 accumulation) ----
    x = x_ref[...].astype(jnp.bfloat16)
    acc_ref[...] += jnp.dot(x, we_ref[...], preferred_element_type=jnp.float32)

    @pl.when(k == pl.num_programs(1) - 1)
    def _():
        # ---- classifier tail (Dropouts identity; BNs folded into w2/b2, w3/b3) ----
        h = _leaky_relu(acc_ref[...] + be_ref[...])
        h = jnp.dot(h.astype(jnp.bfloat16), w2_ref[...],
                    preferred_element_type=jnp.float32) + b2_ref[...]
        h = _leaky_relu(h)
        logits = jnp.dot(h.astype(jnp.bfloat16), w3_ref[...],
                         preferred_element_type=jnp.float32) + b3_ref[...]

        # Softmax(dim=1) over the first NUM_CLASSES lanes; padded lanes -> -inf -> 0.
        col = lax.broadcasted_iota(jnp.int32, logits.shape, 1)
        logits = jnp.where(col < NUM_CLASSES, logits, -jnp.inf)
        m = jnp.max(logits, axis=1, keepdims=True)
        e = jnp.exp(logits - m)
        out_ref[...] = (e / jnp.sum(e, axis=1, keepdims=True)).astype(out_ref.dtype)


def _fold_bn_into_next_linear(w, b, gamma, beta, mean, var):
    """Eval-mode BN (per-feature affine) applied BEFORE a Linear, folded into it.

    out = ((h - mean) * rsqrt(var+eps) * gamma + beta) @ w + b
        = h @ (scale * w) + (shift @ w + b)
    """
    scale = gamma * lax.rsqrt(var + BN_EPS)        # [1, d]
    shift = beta - mean * scale                    # [1, d]
    w_f = w * scale.reshape(-1, 1)                 # [d, out]
    b_f = b + shift @ w                            # [1, out]
    return w_f, b_f


@jax.jit
def encoder_classifier(x, params):
    """x: [N, C, H, W] float32 -> probabilities [N, 2] float32."""
    n = x.shape[0]
    x_flat = x.reshape(n, -1)
    k = x_flat.shape[1]
    k_pad = _round_up(k, 128)

    # ---- per-generation tile sizing (v7x: 64 MiB VMEM; v5e/v6e: 128 MiB) ----
    vmem_cap = _vmem_capacity_bytes()
    x_budget = int(0.45 * vmem_cap)                # bytes for the double-buffered x tile

    n_rows = _round_up(n, 16)                      # 16-row align (bf16 packs 2 rows/sublane)
    if n_rows >= 32:
        # Guarantee >= 2 batch grid steps so "parallel" can shard across v7x's 2 TCs.
        tile_b = min(TILE_B_CAP, _round_up(_cdiv(n_rows, 2), 16))
    else:
        tile_b = n_rows
    n_pad = _round_up(n_rows, tile_b)

    # K tile: as large as the x budget allows (multiple of 128), balanced across steps.
    tk_max = max(128, (x_budget // (2 * 4 * tile_b)) // 128 * 128)
    kb = k_pad // 128
    num_k = _cdiv(kb, max(1, tk_max // 128))
    tk = _cdiv(kb, num_k) * 128
    k_full = tk * num_k

    pad_b = n_pad - n
    pad_k = k_full - k
    if pad_b or pad_k:
        x_flat = jnp.pad(x_flat, ((0, pad_b), (0, pad_k)))

    # ---- fold encoder Linear into classifier Linear1 (Dropout is identity in eval) ----
    we_f = params["we"] @ params["w1"]                       # [K, 32]
    be_f = params["be"] @ params["w1"] + params["b1"]        # [1, 32]
    if pad_k:
        we_f = jnp.pad(we_f, ((0, pad_k), (0, 0)))
    we_f = we_f.astype(jnp.bfloat16)

    # ---- fold eval-mode BatchNorms into the following Linears (exact) ----
    w2, b2 = _fold_bn_into_next_linear(
        params["w2"], params["b2"],
        params["g1"], params["bb1"], params["m1"], params["v1"])
    w3, b3 = _fold_bn_into_next_linear(
        params["w3"], params["b3"],
        params["g2"], params["bb2"], params["m2"], params["v2"])
    w3 = jnp.pad(w3, ((0, 0), (0, OUT_PAD - NUM_CLASSES)))
    b3 = jnp.pad(b3, ((0, 0), (0, OUT_PAD - NUM_CLASSES)))
    w2 = w2.astype(jnp.bfloat16)
    w3 = w3.astype(jnp.bfloat16)

    grid = (n_pad // tile_b, num_k)

    def resident(shape):
        # Constant index_map -> block stays resident in VMEM across all grid steps.
        return pl.BlockSpec(shape, lambda i, kk: (0, 0))

    in_specs = [
        pl.BlockSpec((tile_b, tk), lambda i, kk: (i, kk)),   # x: f32, streamed
        pl.BlockSpec((tk, H1), lambda i, kk: (kk, 0)),       # folded encoder weight
        resident((1, H1)),
        resident((H1, H2)), resident((1, H2)),
        resident((H2, OUT_PAD)), resident((1, OUT_PAD)),
    ]
    out_specs = pl.BlockSpec((tile_b, OUT_PAD), lambda i, kk: (i, 0))

    # x (f32, 2 buffers) + folded weight (bf16, 2 buffers) + bf16 out (2 buffers)
    # + small weights counted twice (in case the pipeliner double-buffers invariants)
    # + accumulator scratch (lane-padded) + compiler scratch headroom.
    needed = (2 * tile_b * tk * 4
              + 2 * tk * H1 * 2
              + 2 * tile_b * OUT_PAD * 2
              + 2 * (H1 * H2 + H2 * OUT_PAD + H1 + H2 + OUT_PAD) * 4
              + tile_b * 128 * 4
              + (4 << 20))
    vmem_limit = int(min(max(needed, 32 << 20), int(0.9 * vmem_cap)))

    probs_pad = pl.pallas_call(
        encoder_classifier_kernel,
        out_shape=jax.ShapeDtypeStruct((n_pad, OUT_PAD), jnp.bfloat16),
        grid=grid,
        in_specs=in_specs,
        out_specs=out_specs,
        scratch_shapes=[pltpu.VMEM((tile_b, H1), jnp.float32)],
        compiler_params=pltpu.CompilerParams(
            dimension_semantics=("parallel", "arbitrary"),
            vmem_limit_bytes=vmem_limit,
        ),
    )(x_flat, we_f, be_f, w2, b2, w3, b3)

    return probs_pad[:n, :NUM_CLASSES].astype(jnp.float32)


def reference_forward(x, params):
    """Pure-JAX f32 reference of the original (eval-mode) module for validation."""
    n = x.shape[0]
    z = x.reshape(n, -1) @ params["we"] + params["be"]
    h = z @ params["w1"] + params["b1"]
    h = jnp.where(h > 0, h, LEAKY_SLOPE * h)
    h = (h - params["m1"]) * lax.rsqrt(params["v1"] + BN_EPS) * params["g1"] + params["bb1"]
    h = h @ params["w2"] + params["b2"]
    h = jnp.where(h > 0, h, LEAKY_SLOPE * h)
    h = (h - params["m2"]) * lax.rsqrt(params["v2"] + BN_EPS) * params["g2"] + params["bb2"]
    logits = h @ params["w3"] + params["b3"]
    return jax.nn.softmax(logits, axis=1)


def init_params(key, in_features):
    """Deterministic parameter init mirroring the module's layer shapes."""
    ks = jax.random.split(key, 16)

    def lin(kw, kb, fan_in, fan_out):
        bound = 1.0 / (fan_in ** 0.5)
        w = jax.random.uniform(kw, (fan_in, fan_out), jnp.float32, -bound, bound)
        b = jax.random.uniform(kb, (1, fan_out), jnp.float32, -bound, bound)
        return w, b

    we, be = lin(ks[0], ks[1], in_features, LATENT)   # encoder latent projection
    w1, b1 = lin(ks[2], ks[3], LATENT, H1)
    w2, b2 = lin(ks[4], ks[5], H1, H2)
    w3, b3 = lin(ks[6], ks[7], H2, NUM_CLASSES)

    def bn(kg, kb, km, kv, dim):
        gamma = 1.0 + 0.1 * jax.random.normal(kg, (1, dim), jnp.float32)
        beta = 0.1 * jax.random.normal(kb, (1, dim), jnp.float32)
        mean = 0.1 * jax.random.normal(km, (1, dim), jnp.float32)
        var = jnp.abs(1.0 + 0.1 * jax.random.normal(kv, (1, dim), jnp.float32))
        return gamma, beta, mean, var

    g1, bb1, m1, v1 = bn(ks[8], ks[9], ks[10], ks[11], H1)
    g2, bb2, m2, v2 = bn(ks[12], ks[13], ks[14], ks[15], H2)

    return dict(
        we=we, be=be,
        w1=w1, b1=b1, g1=g1, bb1=bb1, m1=m1, v1=v1,
        w2=w2, b2=b2, g2=g2, bb2=bb2, m2=m2, v2=v2,
        w3=w3, b3=b3,
    )


if __name__ == "__main__":
    key = jax.random.PRNGKey(0)
    k_x, k_p = jax.random.split(key)

    # Small shapes consistent with the forward: NCHW image -> 128-d latent -> 2 classes.
    N, C, H, W = 2, 4, 16, 16
    x = jax.random.normal(k_x, (N, C, H, W), jnp.float32)
    params = init_params(k_p, C * H * W)

    probs = encoder_classifier(x, params)
    probs = jax.block_until_ready(probs)

    assert probs.shape == (N, NUM_CLASSES)
    assert bool(jnp.all(jnp.isfinite(probs)))
    # rows of a softmax must sum to 1 (bf16 output rounding -> loose atol)
    assert bool(jnp.allclose(jnp.sum(probs, axis=1), 1.0, atol=2e-2))
    # match the pure-JAX f32 reference (tolerance allows bf16 matmul/output rounding)
    ref = reference_forward(x, params)
    assert bool(jnp.allclose(probs, ref, atol=5e-2))

    print("KERNEL_OK")
</pallas_src>

<mosaic_0001>
module attributes {stable_mosaic.version = 11 : i64} {
  func.func @encoder_classifier_kernel(%arg0: i32, %arg1: i32, %arg2: memref<16x1024xf32, #tpu.memory_space<vmem>>, %arg3: memref<1024x32xbf16, #tpu.memory_space<vmem>>, %arg4: memref<1x32xf32, #tpu.memory_space<vmem>>, %arg5: memref<32x16xbf16, #tpu.memory_space<vmem>>, %arg6: memref<1x16xf32, #tpu.memory_space<vmem>>, %arg7: memref<16x128xbf16, #tpu.memory_space<vmem>>, %arg8: memref<1x128xf32, #tpu.memory_space<vmem>>, %arg9: memref<16x128xbf16, #tpu.memory_space<vmem>>, %arg10: memref<16x32xf32, #tpu.memory_space<vmem>>) attributes {dimension_semantics = [#tpu.dimension_semantics<parallel>, #tpu.dimension_semantics<arbitrary>], iteration_bounds = array<i64: 1, 1>, scalar_prefetch = 0 : i64, scratch_operands = 1 : i64, tpu.core_type = #tpu.core_type<tc>, window_params = [{transform_indices = @transform_0, window_bounds = array<i64: 16, 1024>}, {transform_indices = @transform_1, window_bounds = array<i64: 1024, 32>}, {pipeline_mode = #tpu.pipeline_mode<synchronous>, transform_indices = @transform_2, window_bounds = array<i64: 1, 32>}, {pipeline_mode = #tpu.pipeline_mode<synchronous>, transform_indices = @transform_3, window_bounds = array<i64: 32, 16>}, {pipeline_mode = #tpu.pipeline_mode<synchronous>, transform_indices = @transform_4, window_bounds = array<i64: 1, 16>}, {pipeline_mode = #tpu.pipeline_mode<synchronous>, transform_indices = @transform_5, window_bounds = array<i64: 16, 128>}, {pipeline_mode = #tpu.pipeline_mode<synchronous>, transform_indices = @transform_6, window_bounds = array<i64: 1, 128>}, {transform_indices = @transform_7, window_bounds = array<i64: 16, 128>}]} {
    %c0_i32 = arith.constant 0 : i32
    %0 = arith.cmpi eq, %arg1, %c0_i32 : i32
    %1 = arith.extui %0 : i1 to i32
    %c0_i32_0 = arith.constant 0 : i32
    %2 = arith.cmpi ne, %1, %c0_i32_0 : i32
    scf.if %2 {
      %cst_10 = arith.constant 0.000000e+00 : f32
      %13 = vector.broadcast %cst_10 : f32 to vector<16x32xf32>
      %c0_11 = arith.constant 0 : index
      %c0_12 = arith.constant 0 : index
      %14 = vector.load %arg10[%c0_11, %c0_12] : memref<16x32xf32, #tpu.memory_space<vmem>>, vector<16x32xf32>
      tpu.vector_store %arg10[%c0_11, %c0_12], %13 {strides = array<i32>} : memref<16x32xf32, #tpu.memory_space<vmem>>, vector<16x32xf32>,
    } else {
    }
    %c0 = arith.constant 0 : index
    %c0_1 = arith.constant 0 : index
    %3 = vector.load %arg2[%c0, %c0_1] : memref<16x1024xf32, #tpu.memory_space<vmem>>, vector<16x1024xf32>
    %4 = arith.truncf %3 : vector<16x1024xf32> to vector<16x1024xbf16>
    %c0_2 = arith.constant 0 : index
    %c0_3 = arith.constant 0 : index
    %5 = vector.load %arg10[%c0_2, %c0_3] : memref<16x32xf32, #tpu.memory_space<vmem>>, vector<16x32xf32>
    %c0_4 = arith.constant 0 : index
    %c0_5 = arith.constant 0 : index
    %6 = vector.load %arg3[%c0_4, %c0_5] : memref<1024x32xbf16, #tpu.memory_space<vmem>>, vector<1024x32xbf16>
    %cst = arith.constant dense<0.000000e+00> : vector<16x32xf32>
    %7 = tpu.matmul %4, %6, %cst {dimension_numbers = #tpu.dot_dimension_numbers<[1], [0], [0], [1], [0, 0, 1, 1], [], []>} : vector<16x1024xbf16>, vector<1024x32xbf16>, vector<16x32xf32> -> vector<16x32xf32>
    %8 = arith.addf %5, %7 : vector<16x32xf32>
    %c0_6 = arith.constant 0 : index
    %c0_7 = arith.constant 0 : index
    %9 = vector.load %arg10[%c0_6, %c0_7] : memref<16x32xf32, #tpu.memory_space<vmem>>, vector<16x32xf32>
    tpu.vector_store %arg10[%c0_6, %c0_7], %8 {strides = array<i32>} : memref<16x32xf32, #tpu.memory_space<vmem>>, vector<16x32xf32>,
    %c0_i32_8 = arith.constant 0 : i32
    %10 = arith.cmpi eq, %arg1, %c0_i32_8 : i32
    %11 = arith.extui %10 : i1 to i32
    %c0_i32_9 = arith.constant 0 : i32
    %12 = arith.cmpi ne, %11, %c0_i32_9 : i32
    scf.if %12 {
      %c0_10 = arith.constant 0 : index
      %c0_11 = arith.constant 0 : index
      %13 = vector.load %arg10[%c0_10, %c0_11] : memref<16x32xf32, #tpu.memory_space<vmem>>, vector<16x32xf32>
      %c0_12 = arith.constant 0 : index
      %c0_13 = arith.constant 0 : index
      %14 = vector.load %arg4[%c0_12, %c0_13] : memref<1x32xf32, #tpu.memory_space<vmem>>, vector<1x32xf32>
      %15 = vector.broadcast %14 : vector<1x32xf32> to vector<16x32xf32>
      %16 = arith.addf %13, %15 : vector<16x32xf32>
      %cst_14 = arith.constant 0.000000e+00 : f32
      %17 = vector.broadcast %cst_14 : f32 to vector<16x32xf32>
      %18 = arith.cmpf ogt, %16, %17 : vector<16x32xf32>
      %cst_15 = arith.constant 0.00999999977 : f32
      %19 = vector.broadcast %cst_15 : f32 to vector<16x32xf32>
      %20 = arith.mulf %19, %16 : vector<16x32xf32>
      %21 = arith.select %18, %16, %20 : vector<16x32xi1>, vector<16x32xf32>
      %22 = arith.truncf %21 : vector<16x32xf32> to vector<16x32xbf16>
      %c0_16 = arith.constant 0 : index
      %c0_17 = arith.constant 0 : index
      %23 = vector.load %arg5[%c0_16, %c0_17] : memref<32x16xbf16, #tpu.memory_space<vmem>>, vector<32x16xbf16>
      %cst_18 = arith.constant dense<0.000000e+00> : vector<16x16xf32>
      %24 = tpu.matmul %22, %23, %cst_18 {dimension_numbers = #tpu.dot_dimension_numbers<[1], [0], [0], [1], [0, 0, 1, 1], [], []>} : vector<16x32xbf16>, vector<32x16xbf16>, vector<16x16xf32> -> vector<16x16xf32>
      %c0_19 = arith.constant 0 : index
      %c0_20 = arith.constant 0 : index
      %25 = vector.load %arg6[%c0_19, %c0_20] : memref<1x16xf32, #tpu.memory_space<vmem>>, vector<1x16xf32>
      %26 = vector.broadcast %25 : vector<1x16xf32> to vector<16x16xf32>
      %27 = arith.addf %24, %26 : vector<16x16xf32>
      %cst_21 = arith.constant 0.000000e+00 : f32
      %28 = vector.broadcast %cst_21 : f32 to vector<16x16xf32>
      %29 = arith.cmpf ogt, %27, %28 : vector<16x16xf32>
      %cst_22 = arith.constant 0.00999999977 : f32
      %30 = vector.broadcast %cst_22 : f32 to vector<16x16xf32>
      %31 = arith.mulf %30, %27 : vector<16x16xf32>
      %32 = arith.select %29, %27, %31 : vector<16x16xi1>, vector<16x16xf32>
      %33 = arith.truncf %32 : vector<16x16xf32> to vector<16x16xbf16>
      %c0_23 = arith.constant 0 : index
      %c0_24 = arith.constant 0 : index
      %34 = vector.load %arg7[%c0_23, %c0_24] : memref<16x128xbf16, #tpu.memory_space<vmem>>, vector<16x128xbf16>
      %cst_25 = arith.constant dense<0.000000e+00> : vector<16x128xf32>
      %35 = tpu.matmul %33, %34, %cst_25 {dimension_numbers = #tpu.dot_dimension_numbers<[1], [0], [0], [1], [0, 0, 1, 1], [], []>} : vector<16x16xbf16>, vector<16x128xbf16>, vector<16x128xf32> -> vector<16x128xf32>
      %c0_26 = arith.constant 0 : index
      %c0_27 = arith.constant 0 : index
      %36 = vector.load %arg8[%c0_26, %c0_27] : memref<1x128xf32, #tpu.memory_space<vmem>>, vector<1x128xf32>
      %37 = vector.broadcast %36 : vector<1x128xf32> to vector<16x128xf32>
      %38 = arith.addf %35, %37 : vector<16x128xf32>
      %39 = tpu.iota {dimensions = array<i32: 1>} : vector<16x128xi32>
      %c2_i32 = arith.constant 2 : i32
      %40 = vector.broadcast %c2_i32 : i32 to vector<16x128xi32>
      %41 = arith.cmpi slt, %39, %40 : vector<16x128xi32>
      %cst_28 = arith.constant 0xFF800000 : f32
      %42 = vector.broadcast %cst_28 : f32 to vector<16x128xf32>
      %43 = arith.select %41, %38, %42 : vector<16x128xi1>, vector<16x128xf32>
      %cst_29 = arith.constant dense<0xFF800000> : vector<16xf32>
      %44 = vector.multi_reduction <maximumf>, %43, %cst_29 [1] : vector<16x128xf32> to vector<16xf32>
      %45 = vector.shape_cast %44 : vector<16xf32> to vector<16x1xf32>
      %46 = vector.broadcast %45 : vector<16x1xf32> to vector<16x128xf32>
      %47 = arith.subf %43, %46 : vector<16x128xf32>
      %48 = math.exp %47 : vector<16x128xf32>
      %cst_30 = arith.constant dense<0.000000e+00> : vector<16xf32>
      %49 = vector.multi_reduction <add>, %48, %cst_30 [1] : vector<16x128xf32> to vector<16xf32>
      %50 = vector.shape_cast %49 : vector<16xf32> to vector<16x1xf32>
      %51 = vector.broadcast %50 : vector<16x1xf32> to vector<16x128xf32>
      %52 = arith.divf %48, %51 : vector<16x128xf32>
      %53 = arith.truncf %52 : vector<16x128xf32> to vector<16x128xbf16>
      %c0_31 = arith.constant 0 : index
      %c0_32 = arith.constant 0 : index
      %54 = vector.load %arg9[%c0_31, %c0_32] : memref<16x128xbf16, #tpu.memory_space<vmem>>, vector<16x128xbf16>
      tpu.vector_store %arg9[%c0_31, %c0_32], %53 {strides = array<i32>} : memref<16x128xbf16, #tpu.memory_space<vmem>>, vector<16x128xbf16>,
    } else {
    }
    return
  }
  func.func @transform_0(%arg0: i32, %arg1: i32) -> (i32, i32) {
    %c0_i32 = arith.constant 0 : i32
    return %arg0, %arg1 : i32, i32
  }
  func.func @transform_1(%arg0: i32, %arg1: i32) -> (i32, i32) {
    %c0_i32 = arith.constant 0 : i32
    %c0_i32_0 = arith.constant 0 : i32
    return %arg1, %c0_i32 : i32, i32
  }
  func.func @transform_2(%arg0: i32, %arg1: i32) -> (i32, i32) {
    %c0_i32 = arith.constant 0 : i32
    %c0_i32_0 = arith.constant 0 : i32
    %c0_i32_1 = arith.constant 0 : i32
    return %c0_i32, %c0_i32_0 : i32, i32
  }
  func.func @transform_3(%arg0: i32, %arg1: i32) -> (i32, i32) {
    %c0_i32 = arith.constant 0 : i32
    %c0_i32_0 = arith.constant 0 : i32
    %c0_i32_1 = arith.constant 0 : i32
    return %c0_i32, %c0_i32_0 : i32, i32
  }
  func.func @transform_4(%arg0: i32, %arg1: i32) -> (i32, i32) {
    %c0_i32 = arith.constant 0 : i32
    %c0_i32_0 = arith.constant 0 : i32
    %c0_i32_1 = arith.constant 0 : i32
    return %c0_i32, %c0_i32_0 : i32, i32
  }
  func.func @transform_5(%arg0: i32, %arg1: i32) -> (i32, i32) {
    %c0_i32 = arith.constant 0 : i32
    %c0_i32_0 = arith.constant 0 : i32
    %c0_i32_1 = arith.constant 0 : i32
    return %c0_i32, %c0_i32_0 : i32, i32
  }
  func.func @transform_6(%arg0: i32, %arg1: i32) -> (i32, i32) {
    %c0_i32 = arith.constant 0 : i32
    %c0_i32_0 = arith.constant 0 : i32
    %c0_i32_1 = arith.constant 0 : i32
    return %c0_i32, %c0_i32_0 : i32, i32
  }
  func.func @transform_7(%arg0: i32, %arg1: i32) -> (i32, i32) {
    %c0_i32 = arith.constant 0 : i32
    %c0_i32_0 = arith.constant 0 : i32
    return %arg0, %c0_i32 : i32, i32
  }
}

</mosaic_0001>

<llo_original>
// kernel: encoder_classifier.1
$region0: #{encoder_classifier.1}
  #allocation0 [shape = 'u32[]', space=smem, size = 0x4, offset = 0x4, fixed_abs, tag = 'smem constant byte address 0x4 - core index']
  #allocation1 [shape = 'u32[72,128]{1,0:T(1,128)}', space=vmem, size = 0x9000, scoped, tag = 'internal scratch']
  #allocation2 [shape = 'f32[16,32]{1,0:T(8,128)}', space=vmem, size = 0x2000, scoped, tag = 'scratch operand']
  %s0 = inlined_call_operand.vmem [shape: f32[16,1024], index: 0, kind: input, shape index: {}]
  %s1 = inlined_call_operand.vmem [shape: bf16[1024,32], index: 1, kind: input, shape index: {}]
  %s2 = inlined_call_operand.vmem [shape: f32[1,32], index: 2, kind: input, shape index: {}]
  %s3 = inlined_call_operand.vmem [shape: bf16[32,16], index: 3, kind: input, shape index: {}]
  %s4 = inlined_call_operand.vmem [shape: f32[1,16], index: 4, kind: input, shape index: {}]
  %s5 = inlined_call_operand.vmem [shape: bf16[16,128], index: 5, kind: input, shape index: {}]
  %s6 = inlined_call_operand.vmem [shape: f32[1,128], index: 6, kind: input, shape index: {}]
  %s7 = inlined_call_operand.vmem [shape: bf16[16,128], index: 7, kind: output, shape index: {}]
  %s8 = sld [smem:[#allocation0]]
  $region46: #{encoder_classifier.1} parent=0
    _
  %s10 = ssub.s32 1, %s8
  %s11 = scalar_select 0, %s10, %s8
  // Predicated region
  $region2: #{encoder_classifier.1} parent=0 // pred_check
    _
  $region3: #{encoder_classifier.1} parent=0 // pred_check_branch
    %13 = sbr.rel (0) target = $region5
  $region4: #{encoder_classifier.1} parent=0 // pred_region
    _
  $region5: #{encoder_classifier.1} parent=0 // pred_fallthru
    _
  // Predicated region
  $region6: #{encoder_classifier.1} parent=0 // pred_check
    _
  $region7: #{encoder_classifier.1} parent=0 // pred_check_branch
    %15 = sbr.rel (0) target = $region9
  $region8: #{encoder_classifier.1} parent=0 // pred_region
    _
  $region9: #{encoder_classifier.1} parent=0 // pred_fallthru
    _
  // Predicated region
  $region10: #{encoder_classifier.1} parent=0 // pred_check
    _
  $region11: #{encoder_classifier.1} parent=0 // pred_check_branch
    %17 = sbr.rel (0) target = $region13
  $region12: #{encoder_classifier.1} parent=0 // pred_region
    _
  $region13: #{encoder_classifier.1} parent=0 // pred_fallthru
    _
  // Predicated region
  $region14: #{encoder_classifier.1} parent=0 // pred_check
    _
  $region15: #{encoder_classifier.1} parent=0 // pred_check_branch
    %19 = sbr.rel (0) target = $region17
  $region16: #{encoder_classifier.1} parent=0 // pred_region
    _
  $region17: #{encoder_classifier.1} parent=0 // pred_fallthru
    _
  // Predicated region
  $region18: #{encoder_classifier.1} parent=0 // pred_check
    _
  $region19: #{encoder_classifier.1} parent=0 // pred_check_branch
    %21 = sbr.rel (0) target = $region21
  $region20: #{encoder_classifier.1} parent=0 // pred_region
    _
  $region21: #{encoder_classifier.1} parent=0 // pred_fallthru
    _
  // Predicated region
  $region22: #{encoder_classifier.1} parent=0 // pred_check
    _
  $region23: #{encoder_classifier.1} parent=0 // pred_check_branch
    %23 = sbr.rel (0) target = $region25
  $region24: #{encoder_classifier.1} parent=0 // pred_region
    _
  $region25: #{encoder_classifier.1} parent=0 // pred_fallthru
    _
  // Predicated region
  $region26: #{encoder_classifier.1} parent=0 // pred_check
    _
  $region27: #{encoder_classifier.1} parent=0 // pred_check_branch
    %25 = sbr.rel (0) target = $region29
  $region28: #{encoder_classifier.1} parent=0 // pred_region
    _
  $region29: #{encoder_classifier.1} parent=0 // pred_fallthru
    _
  %p27 = scmp.eq.s32.totalorder 0, 0
  // Predicated region
  $region30: #{encoder_classifier.1} parent=0 // pred_check
    %p28 = pneg %p27
  $region31: #{encoder_classifier.1} parent=0 // pred_check_branch
    %30 = sbr.rel (%p28) target = $region33
  $region32: #{encoder_classifier.1} parent=0 // pred_region
    %vm31 = vcmask 261120
    %32 = vst.msk [vmem:[#allocation2] sm:$0xff] %vm31, 0.0
    %33 = vst.msk [vmem:[#allocation2 + $0x8] sm:$0xff] %vm31, 0.0
  $region33: #{encoder_classifier.1} parent=0 // pred_fallthru
    _
  %v34 = vld [vmem:[%s0] sm:$0xff]
  %v35 = vld [vmem:[%s0 + $0x8] sm:$0xff]
  %v36 = vld [vmem:[%s0 + $0x10] sm:$0xff]
  %v37 = vld [vmem:[%s0 + $0x18] sm:$0xff]
  %v38 = vld [vmem:[%s0 + $0x20] sm:$0xff]
  %v39 = vld [vmem:[%s0 + $0x28] sm:$0xff]
  %v40 = vld [vmem:[%s0 + $0x30] sm:$0xff]
  %v41 = vld [vmem:[%s0 + $0x38] sm:$0xff]
  %v42 = vld [vmem:[%s0 + $0x40] sm:$0xff]
  %v43 = vld [vmem:[%s0 + $0x48] sm:$0xff]
  %v44 = vld [vmem:[%s0 + $0x50] sm:$0xff]
  %v45 = vld [vmem:[%s0 + $0x58] sm:$0xff]
  %v46 = vld [vmem:[%s0 + $0x60] sm:$0xff]
  %v47 = vld [vmem:[%s0 + $0x68] sm:$0xff]
  %v48 = vld [vmem:[%s0 + $0x70] sm:$0xff]
  %v49 = vld [vmem:[%s0 + $0x78] sm:$0xff]
  %v50 = vpack.c.bf16 %v42, %v34
  %v51 = vpack.c.bf16 %v43, %v35
  %v52 = vpack.c.bf16 %v44, %v36
  %v53 = vpack.c.bf16 %v45, %v37
  %v54 = vpack.c.bf16 %v46, %v38
  %v55 = vpack.c.bf16 %v47, %v39
  %v56 = vpack.c.bf16 %v48, %v40
  %v57 = vpack.c.bf16 %v49, %v41
  %v58 = vld [vmem:[#allocation2] sm:$0xff]
  %v59 = vld [vmem:[#allocation2 + $0x8] sm:$0xff]
  %v60 = vld [vmem:[%s1] sm:$0xf]
  %v61 = vld [vmem:[%s1 + $0x4] sm:$0xf]
  %v62 = vld [vmem:[%s1 + $0x8] sm:$0xf]
  %v63 = vld [vmem:[%s1 + $0xc] sm:$0xf]
  %v64 = vld [vmem:[%s1 + $0x10] sm:$0xf]
  %v65 = vld [vmem:[%s1 + $0x14] sm:$0xf]
  %v66 = vld [vmem:[%s1 + $0x18] sm:$0xf]
  %v67 = vld [vmem:[%s1 + $0x1c] sm:$0xf]
  %v68 = vld [vmem:[%s1 + $0x20] sm:$0xf]
  %v69 = vld [vmem:[%s1 + $0x24] sm:$0xf]
  %v70 = vld [vmem:[%s1 + $0x28] sm:$0xf]
  %v71 = vld [vmem:[%s1 + $0x2c] sm:$0xf]
  %v72 = vld [vmem:[%s1 + $0x30] sm:$0xf]
  %v73 = vld [vmem:[%s1 + $0x34] sm:$0xf]
  %v74 = vld [vmem:[%s1 + $0x38] sm:$0xf]
  %v75 = vld [vmem:[%s1 + $0x3c] sm:$0xf]
  %v76 = vld [vmem:[%s1 + $0x40] sm:$0xf]
  %v77 = vld [vmem:[%s1 + $0x44] sm:$0xf]
  %v78 = vld [vmem:[%s1 + $0x48] sm:$0xf]
  %v79 = vld [vmem:[%s1 + $0x4c] sm:$0xf]
  %v80 = vld [vmem:[%s1 + $0x50] sm:$0xf]
  %v81 = vld [vmem:[%s1 + $0x54] sm:$0xf]
  %v82 = vld [vmem:[%s1 + $0x58] sm:$0xf]
  %v83 = vld [vmem:[%s1 + $0x5c] sm:$0xf]
  %v84 = vld [vmem:[%s1 + $0x60] sm:$0xf]
  %v85 = vld [vmem:[%s1 + $0x64] sm:$0xf]
  %v86 = vld [vmem:[%s1 + $0x68] sm:$0xf]
  %v87 = vld [vmem:[%s1 + $0x6c] sm:$0xf]
  %v88 = vld [vmem:[%s1 + $0x70] sm:$0xf]
  %v89 = vld [vmem:[%s1 + $0x74] sm:$0xf]
  %v90 = vld [vmem:[%s1 + $0x78] sm:$0xf]
  %v91 = vld [vmem:[%s1 + $0x7c] sm:$0xf]
  %v92 = vld [vmem:[%s1 + $0x80] sm:$0xf]
  %v93 = vld [vmem:[%s1 + $0x84] sm:$0xf]
  %v94 = vld [vmem:[%s1 + $0x88] sm:$0xf]
  %v95 = vld [vmem:[%s1 + $0x8c] sm:$0xf]
  %v96 = vld [vmem:[%s1 + $0x90] sm:$0xf]
  %v97 = vld [vmem:[%s1 + $0x94] sm:$0xf]
  %v98 = vld [vmem:[%s1 + $0x98] sm:$0xf]
  %v99 = vld [vmem:[%s1 + $0x9c] sm:$0xf]
  %v100 = vld [vmem:[%s1 + $0xa0] sm:$0xf]
  %v101 = vld [vmem:[%s1 + $0xa4] sm:$0xf]
  %v102 = vld [vmem:[%s1 + $0xa8] sm:$0xf]
  %v103 = vld [vmem:[%s1 + $0xac] sm:$0xf]
  %v104 = vld [vmem:[%s1 + $0xb0] sm:$0xf]
  %v105 = vld [vmem:[%s1 + $0xb4] sm:$0xf]
  %v106 = vld [vmem:[%s1 + $0xb8] sm:$0xf]
  %v107 = vld [vmem:[%s1 + $0xbc] sm:$0xf]
  %v108 = vld [vmem:[%s1 + $0xc0] sm:$0xf]
  %v109 = vld [vmem:[%s1 + $0xc4] sm:$0xf]
  %v110 = vld [vmem:[%s1 + $0xc8] sm:$0xf]
  %v111 = vld [vmem:[%s1 + $0xcc] sm:$0xf]
  %v112 = vld [vmem:[%s1 + $0xd0] sm:$0xf]
  %v113 = vld [vmem:[%s1 + $0xd4] sm:$0xf]
  %v114 = vld [vmem:[%s1 + $0xd8] sm:$0xf]
  %v115 = vld [vmem:[%s1 + $0xdc] sm:$0xf]
  %v116 = vld [vmem:[%s1 + $0xe0] sm:$0xf]
  %v117 = vld [vmem:[%s1 + $0xe4] sm:$0xf]
  %v118 = vld [vmem:[%s1 + $0xe8] sm:$0xf]
  %v119 = vld [vmem:[%s1 + $0xec] sm:$0xf]
  %v120 = vld [vmem:[%s1 + $0xf0] sm:$0xf]
  %v121 = vld [vmem:[%s1 + $0xf4] sm:$0xf]
  %v122 = vld [vmem:[%s1 + $0xf8] sm:$0xf]
  %v123 = vld [vmem:[%s1 + $0xfc] sm:$0xf]
  %v124 = vld [vmem:[%s1 + $0x100] sm:$0xf]
  %v125 = vld [vmem:[%s1 + $0x104] sm:$0xf]
  %v126 = vld [vmem:[%s1 + $0x108] sm:$0xf]
  %v127 = vld [vmem:[%s1 + $0x10c] sm:$0xf]
  %v128 = vld [vmem:[%s1 + $0x110] sm:$0xf]
  %v129 = vld [vmem:[%s1 + $0x114] sm:$0xf]
  %v130 = vld [vmem:[%s1 + $0x118] sm:$0xf]
  %v131 = vld [vmem:[%s1 + $0x11c] sm:$0xf]
  %v132 = vld [vmem:[%s1 + $0x120] sm:$0xf]
  %v133 = vld [vmem:[%s1 + $0x124] sm:$0xf]
  %v134 = vld [vmem:[%s1 + $0x128] sm:$0xf]
  %v135 = vld [vmem:[%s1 + $0x12c] sm:$0xf]
  %v136 = vld [vmem:[%s1 + $0x130] sm:$0xf]
  %v137 = vld [vmem:[%s1 + $0x134] sm:$0xf]
  %v138 = vld [vmem:[%s1 + $0x138] sm:$0xf]
  %v139 = vld [vmem:[%s1 + $0x13c] sm:$0xf]
  %v140 = vld [vmem:[%s1 + $0x140] sm:$0xf]
  %v141 = vld [vmem:[%s1 + $0x144] sm:$0xf]
  %v142 = vld [vmem:[%s1 + $0x148] sm:$0xf]
  %v143 = vld [vmem:[%s1 + $0x14c] sm:$0xf]
  %v144 = vld [vmem:[%s1 + $0x150] sm:$0xf]
  %v145 = vld [vmem:[%s1 + $0x154] sm:$0xf]
  %v146 = vld [vmem:[%s1 + $0x158] sm:$0xf]
  %v147 = vld [vmem:[%s1 + $0x15c] sm:$0xf]
  %v148 = vld [vmem:[%s1 + $0x160] sm:$0xf]
  %v149 = vld [vmem:[%s1 + $0x164] sm:$0xf]
  %v150 = vld [vmem:[%s1 + $0x168] sm:$0xf]
  %v151 = vld [vmem:[%s1 + $0x16c] sm:$0xf]
  %v152 = vld [vmem:[%s1 + $0x170] sm:$0xf]
  %v153 = vld [vmem:[%s1 + $0x174] sm:$0xf]
  %v154 = vld [vmem:[%s1 + $0x178] sm:$0xf]
  %v155 = vld [vmem:[%s1 + $0x17c] sm:$0xf]
  %v156 = vld [vmem:[%s1 + $0x180] sm:$0xf]
  %v157 = vld [vmem:[%s1 + $0x184] sm:$0xf]
  %v158 = vld [vmem:[%s1 + $0x188] sm:$0xf]
  %v159 = vld [vmem:[%s1 + $0x18c] sm:$0xf]
  %v160 = vld [vmem:[%s1 + $0x190] sm:$0xf]
  %v161 = vld [vmem:[%s1 + $0x194] sm:$0xf]
  %v162 = vld [vmem:[%s1 + $0x198] sm:$0xf]
  %v163 = vld [vmem:[%s1 + $0x19c] sm:$0xf]
  %v164 = vld [vmem:[%s1 + $0x1a0] sm:$0xf]
  %v165 = vld [vmem:[%s1 + $0x1a4] sm:$0xf]
  %v166 = vld [vmem:[%s1 + $0x1a8] sm:$0xf]
  %v167 = vld [vmem:[%s1 + $0x1ac] sm:$0xf]
  %v168 = vld [vmem:[%s1 + $0x1b0] sm:$0xf]
  %v169 = vld [vmem:[%s1 + $0x1b4] sm:$0xf]
  %v170 = vld [vmem:[%s1 + $0x1b8] sm:$0xf]
  %v171 = vld [vmem:[%s1 + $0x1bc] sm:$0xf]
  %v172 = vld [vmem:[%s1 + $0x1c0] sm:$0xf]
  %v173 = vld [vmem:[%s1 + $0x1c4] sm:$0xf]
  %v174 = vld [vmem:[%s1 + $0x1c8] sm:$0xf]
  %v175 = vld [vmem:[%s1 + $0x1cc] sm:$0xf]
  %v176 = vld [vmem:[%s1 + $0x1d0] sm:$0xf]
  %v177 = vld [vmem:[%s1 + $0x1d4] sm:$0xf]
  %v178 = vld [vmem:[%s1 + $0x1d8] sm:$0xf]
  %v179 = vld [vmem:[%s1 + $0x1dc] sm:$0xf]
  %v180 = vld [vmem:[%s1 + $0x1e0] sm:$0xf]
  %v181 = vld [vmem:[%s1 + $0x1e4] sm:$0xf]
  %v182 = vld [vmem:[%s1 + $0x1e8] sm:$0xf]
  %v183 = vld [vmem:[%s1 + $0x1ec] sm:$0xf]
  %v184 = vld [vmem:[%s1 + $0x1f0] sm:$0xf]
  %v185 = vld [vmem:[%s1 + $0x1f4] sm:$0xf]
  %v186 = vld [vmem:[%s1 + $0x1f8] sm:$0xf]
  %v187 = vld [vmem:[%s1 + $0x1fc] sm:$0xf]
  %v316 = vunpack.c.l.b16 %v60
  %v317 = vunpack.c.l.b16 %v61
  %v318 = vunpack.c.l.b16 %v62
  %v319 = vunpack.c.l.b16 %v63
  %v320 = vunpack.c.l.b16 %v64
  %v321 = vunpack.c.l.b16 %v65
  %v322 = vunpack.c.l.b16 %v66
  %v323 = vunpack.c.l.b16 %v67
  %v324 = vunpack.c.l.b16 %v68
  %v325 = vunpack.c.l.b16 %v69
  %v326 = vunpack.c.l.b16 %v70
  %v327 = vunpack.c.l.b16 %v71
  %v328 = vunpack.c.l.b16 %v72
  %v329 = vunpack.c.l.b16 %v73
  %v330 = vunpack.c.l.b16 %v74
  %v331 = vunpack.c.l.b16 %v75
  %v332 = vunpack.c.l.b16 %v76
  %v333 = vunpack.c.l.b16 %v77
  %v334 = vunpack.c.l.b16 %v78
  %v335 = vunpack.c.l.b16 %v79
  %v336 = vunpack.c.l.b16 %v80
  %v337 = vunpack.c.l.b16 %v81
  %v338 = vunpack.c.l.b16 %v82
  %v339 = vunpack.c.l.b16 %v83
  %v340 = vunpack.c.l.b16 %v84
  %v341 = vunpack.c.l.b16 %v85
  %v342 = vunpack.c.l.b16 %v86
  %v343 = vunpack.c.l.b16 %v87
  %v344 = vunpack.c.l.b16 %v88
  %v345 = vunpack.c.l.b16 %v89
  %v346 = vunpack.c.l.b16 %v90
  %v347 = vunpack.c.l.b16 %v91
  %v348 = vunpack.c.l.b16 %v92
  %v349 = vunpack.c.l.b16 %v93
  %v350 = vunpack.c.l.b16 %v94
  %v351 = vunpack.c.l.b16 %v95
  %v352 = vunpack.c.l.b16 %v96
  %v353 = vunpack.c.l.b16 %v97
  %v354 = vunpack.c.l.b16 %v98
  %v355 = vunpack.c.l.b16 %v99
  %v356 = vunpack.c.l.b16 %v100
  %v357 = vunpack.c.l.b16 %v101
  %v358 = vunpack.c.l.b16 %v102
  %v359 = vunpack.c.l.b16 %v103
  %v360 = vunpack.c.l.b16 %v104
  %v361 = vunpack.c.l.b16 %v105
  %v362 = vunpack.c.l.b16 %v106
  %v363 = vunpack.c.l.b16 %v107
  %v364 = vunpack.c.l.b16 %v108
  %v365 = vunpack.c.l.b16 %v109
  %v366 = vunpack.c.l.b16 %v110
  %v367 = vunpack.c.l.b16 %v111
  %v368 = vunpack.c.l.b16 %v112
  %v369 = vunpack.c.l.b16 %v113
  %v370 = vunpack.c.l.b16 %v114
  %v371 = vunpack.c.l.b16 %v115
  %v372 = vunpack.c.l.b16 %v116
  %v373 = vunpack.c.l.b16 %v117
  %v374 = vunpack.c.l.b16 %v118
  %v375 = vunpack.c.l.b16 %v119
  %v376 = vunpack.c.l.b16 %v120
  %v377 = vunpack.c.l.b16 %v121
  %v378 = vunpack.c.l.b16 %v122
  %v379 = vunpack.c.l.b16 %v123
  %v380 = vunpack.c.l.b16 %v124
  %v381 = vunpack.c.l.b16 %v125
  %v382 = vunpack.c.l.b16 %v126
  %v383 = vunpack.c.l.b16 %v127
  %v384 = vunpack.c.l.b16 %v128
  %v385 = vunpack.c.l.b16 %v129
  %v386 = vunpack.c.l.b16 %v130
  %v387 = vunpack.c.l.b16 %v131
  %v388 = vunpack.c.l.b16 %v132
  %v389 = vunpack.c.l.b16 %v133
  %v390 = vunpack.c.l.b16 %v134
  %v391 = vunpack.c.l.b16 %v135
  %v392 = vunpack.c.l.b16 %v136
  %v393 = vunpack.c.l.b16 %v137
  %v394 = vunpack.c.l.b16 %v138
  %v395 = vunpack.c.l.b16 %v139
  %v396 = vunpack.c.l.b16 %v140
  %v397 = vunpack.c.l.b16 %v141
  %v398 = vunpack.c.l.b16 %v142
  %v399 = vunpack.c.l.b16 %v143
  %v400 = vunpack.c.l.b16 %v144
  %v401 = vunpack.c.l.b16 %v145
  %v402 = vunpack.c.l.b16 %v146
  %v403 = vunpack.c.l.b16 %v147
  %v404 = vunpack.c.l.b16 %v148
  %v405 = vunpack.c.l.b16 %v149
  %v406 = vunpack.c.l.b16 %v150
  %v407 = vunpack.c.l.b16 %v151
  %v408 = vunpack.c.l.b16 %v152
  %v409 = vunpack.c.l.b16 %v153
  %v410 = vunpack.c.l.b16 %v154
  %v411 = vunpack.c.l.b16 %v155
  %v412 = vunpack.c.l.b16 %v156
  %v413 = vunpack.c.l.b16 %v157
  %v414 = vunpack.c.l.b16 %v158
  %v415 = vunpack.c.l.b16 %v159
  %v416 = vunpack.c.l.b16 %v160
  %v417 = vunpack.c.l.b16 %v161
  %v418 = vunpack.c.l.b16 %v162
  %v419 = vunpack.c.l.b16 %v163
  %v420 = vunpack.c.l.b16 %v164
  %v421 = vunpack.c.l.b16 %v165
  %v422 = vunpack.c.l.b16 %v166
  %v423 = vunpack.c.l.b16 %v167
  %v424 = vunpack.c.l.b16 %v168
  %v425 = vunpack.c.l.b16 %v169
  %v426 = vunpack.c.l.b16 %v170
  %v427 = vunpack.c.l.b16 %v171
  %v428 = vunpack.c.l.b16 %v172
  %v429 = vunpack.c.l.b16 %v173
  %v430 = vunpack.c.l.b16 %v174
  %v431 = vunpack.c.l.b16 %v175
  %v432 = vunpack.c.l.b16 %v176
  %v433 = vunpack.c.l.b16 %v177
  %v434 = vunpack.c.l.b16 %v178
  %v435 = vunpack.c.l.b16 %v179
  %v436 = vunpack.c.l.b16 %v180
  %v437 = vunpack.c.l.b16 %v181
  %v438 = vunpack.c.l.b16 %v182
  %v439 = vunpack.c.l.b16 %v183
  %v440 = vunpack.c.l.b16 %v184
  %v441 = vunpack.c.l.b16 %v185
  %v442 = vunpack.c.l.b16 %v186
  %v443 = vunpack.c.l.b16 %v187
  %v444 = vpack.c.b16 %v317, %v316
  %v445 = vpack.c.b16 %v319, %v318
  %v446 = vpack.c.b16 %v321, %v320
  %v447 = vpack.c.b16 %v323, %v322
  %v448 = vpack.c.b16 %v325, %v324
  %v449 = vpack.c.b16 %v327, %v326
  %v450 = vpack.c.b16 %v329, %v328
  %v451 = vpack.c.b16 %v331, %v330
  %v452 = vpack.c.b16 %v333, %v332
  %v453 = vpack.c.b16 %v335, %v334
  %v454 = vpack.c.b16 %v337, %v336
  %v455 = vpack.c.b16 %v339, %v338
  %v456 = vpack.c.b16 %v341, %v340
  %v457 = vpack.c.b16 %v343, %v342
  %v458 = vpack.c.b16 %v345, %v344
  %v459 = vpack.c.b16 %v347, %v346
  %v460 = vpack.c.b16 %v349, %v348
  %v461 = vpack.c.b16 %v351, %v350
  %v462 = vpack.c.b16 %v353, %v352
  %v463 = vpack.c.b16 %v355, %v354
  %v464 = vpack.c.b16 %v357, %v356
  %v465 = vpack.c.b16 %v359, %v358
  %v466 = vpack.c.b16 %v361, %v360
  %v467 = vpack.c.b16 %v363, %v362
  %v468 = vpack.c.b16 %v365, %v364
  %v469 = vpack.c.b16 %v367, %v366
  %v470 = vpack.c.b16 %v369, %v368
  %v471 = vpack.c.b16 %v371, %v370
  %v472 = vpack.c.b16 %v373, %v372
  %v473 = vpack.c.b16 %v375, %v374
  %v474 = vpack.c.b16 %v377, %v376
  %v475 = vpack.c.b16 %v379, %v378
  %v476 = vpack.c.b16 %v381, %v380
  %v477 = vpack.c.b16 %v383, %v382
  %v478 = vpack.c.b16 %v385, %v384
  %v479 = vpack.c.b16 %v387, %v386
  %v480 = vpack.c.b16 %v389, %v388
  %v481 = vpack.c.b16 %v391, %v390
  %v482 = vpack.c.b16 %v393, %v392
  %v483 = vpack.c.b16 %v395, %v394
  %v484 = vpack.c.b16 %v397, %v396
  %v485 = vpack.c.b16 %v399, %v398
  %v486 = vpack.c.b16 %v401, %v400
  %v487 = vpack.c.b16 %v403, %v402
  %v488 = vpack.c.b16 %v405, %v404
  %v489 = vpack.c.b16 %v407, %v406
  %v490 = vpack.c.b16 %v409, %v408
  %v491 = vpack.c.b16 %v411, %v410
  %v492 = vpack.c.b16 %v413, %v412
  %v493 = vpack.c.b16 %v415, %v414
  %v494 = vpack.c.b16 %v417, %v416
  %v495 = vpack.c.b16 %v419, %v418
  %v496 = vpack.c.b16 %v421, %v420
  %v497 = vpack.c.b16 %v423, %v422
  %v498 = vpack.c.b16 %v425, %v424
  %v499 = vpack.c.b16 %v427, %v426
  %v500 = vpack.c.b16 %v429, %v428
  %v501 = vpack.c.b16 %v431, %v430
  %v502 = vpack.c.b16 %v433, %v432
  %v503 = vpack.c.b16 %v435, %v434
  %v504 = vpack.c.b16 %v437, %v436
  %v505 = vpack.c.b16 %v439, %v438
  %v506 = vpack.c.b16 %v441, %v440
  %v507 = vpack.c.b16 %v443, %v442
  %572 = vmatpush.bf16.msra.mxu0 %v451
  %573 = vmatpush.bf16.msra.mxu0 %v450
  %574 = vmatpush.bf16.msra.mxu0 %v449
  %575 = vmatpush.bf16.msra.mxu0 %v448
  %576 = vmatpush.bf16.msra.mxu0 %v447
  %577 = vmatpush.bf16.msra.mxu0 %v446
  %578 = vmatpush.bf16.msra.mxu0 %v445
  %579 = vmatpush.bf16.msra.mxu0 %v444
  %580 = vmatmul.bf16.gmra.mxu0 %v50
  %v581 = vpop.f32.mrf.mxu0
  %v582 = vadd.f32 0.0, %v581
  %v583 = vpop.f32.mrf.mxu0
  %v584 = vadd.f32 0.0, %v583
  %585 = vdwg.mxu0
  %586 = vmatpush.bf16.msra.mxu0 %v459
  %587 = vmatpush.bf16.msra.mxu0 %v458
  %588 = vmatpush.bf16.msra.mxu0 %v457
  %589 = vmatpush.bf16.msra.mxu0 %v456
  %590 = vmatpush.bf16.msra.mxu0 %v455
  %591 = vmatpush.bf16.msra.mxu0 %v454
  %592 = vmatpush.bf16.msra.mxu0 %v453
  %593 = vmatpush.bf16.msra.mxu0 %v452
  %594 = vmatmul.bf16.gmra.mxu0 %v51
  %v595 = vpop.f32.mrf.mxu0
  %v596 = vadd.f32 %v582, %v595
  %v597 = vpop.f32.mrf.mxu0
  %v598 = vadd.f32 %v584, %v597
  %599 = vdwg.mxu0
  %600 = vmatpush.bf16.msra.mxu0 %v467
  %601 = vmatpush.bf16.msra.mxu0 %v466
  %602 = vmatpush.bf16.msra.mxu0 %v465
  %603 = vmatpush.bf16.msra.mxu0 %v464
  %604 = vmatpush.bf16.msra.mxu0 %v463
  %605 = vmatpush.bf16.msra.mxu0 %v462
  %606 = vmatpush.bf16.msra.mxu0 %v461
  %607 = vmatpush.bf16.msra.mxu0 %v460
  %608 = vmatmul.bf16.gmra.mxu0 %v52
  %v609 = vpop.f32.mrf.mxu0
  %v610 = vadd.f32 %v596, %v609
  %v611 = vpop.f32.mrf.mxu0
  %v612 = vadd.f32 %v598, %v611
  %613 = vdwg.mxu0
  %614 = vmatpush.bf16.msra.mxu0 %v475
  %615 = vmatpush.bf16.msra.mxu0 %v474
  %616 = vmatpush.bf16.msra.mxu0 %v473
  %617 = vmatpush.bf16.msra.mxu0 %v472
  %618 = vmatpush.bf16.msra.mxu0 %v471
  %619 = vmatpush.bf16.msra.mxu0 %v470
  %620 = vmatpush.bf16.msra.mxu0 %v469
  %621 = vmatpush.bf16.msra.mxu0 %v468
  %622 = vmatmul.bf16.gmra.mxu0 %v53
  %v623 = vpop.f32.mrf.mxu0
  %v624 = vadd.f32 %v610, %v623
  %v625 = vpop.f32.mrf.mxu0
  %v626 = vadd.f32 %v612, %v625
  %627 = vdwg.mxu0
  %628 = vmatpush.bf16.msra.mxu0 %v483
  %629 = vmatpush.bf16.msra.mxu0 %v482
  %630 = vmatpush.bf16.msra.mxu0 %v481
  %631 = vmatpush.bf16.msra.mxu0 %v480
  %632 = vmatpush.bf16.msra.mxu0 %v479
  %633 = vmatpush.bf16.msra.mxu0 %v478
  %634 = vmatpush.bf16.msra.mxu0 %v477
  %635 = vmatpush.bf16.msra.mxu0 %v476
  %636 = vmatmul.bf16.gmra.mxu0 %v54
  %v637 = vpop.f32.mrf.mxu0
  %v638 = vadd.f32 %v624, %v637
  %v639 = vpop.f32.mrf.mxu0
  %v640 = vadd.f32 %v626, %v639
  %641 = vdwg.mxu0
  %642 = vmatpush.bf16.msra.mxu0 %v491
  %643 = vmatpush.bf16.msra.mxu0 %v490
  %644 = vmatpush.bf16.msra.mxu0 %v489
  %645 = vmatpush.bf16.msra.mxu0 %v488
  %646 = vmatpush.bf16.msra.mxu0 %v487
  %647 = vmatpush.bf16.msra.mxu0 %v486
  %648 = vmatpush.bf16.msra.mxu0 %v485
  %649 = vmatpush.bf16.msra.mxu0 %v484
  %650 = vmatmul.bf16.gmra.mxu0 %v55
  %v651 = vpop.f32.mrf.mxu0
  %v652 = vadd.f32 %v638, %v651
  %v653 = vpop.f32.mrf.mxu0
  %v654 = vadd.f32 %v640, %v653
  %655 = vdwg.mxu0
  %656 = vmatpush.bf16.msra.mxu0 %v499
  %657 = vmatpush.bf16.msra.mxu0 %v498
  %658 = vmatpush.bf16.msra.mxu0 %v497
  %659 = vmatpush.bf16.msra.mxu0 %v496
  %660 = vmatpush.bf16.msra.mxu0 %v495
  %661 = vmatpush.bf16.msra.mxu0 %v494
  %662 = vmatpush.bf16.msra.mxu0 %v493
  %663 = vmatpush.bf16.msra.mxu0 %v492
  %664 = vmatmul.bf16.gmra.mxu0 %v56
  %v665 = vpop.f32.mrf.mxu0
  %v666 = vadd.f32 %v652, %v665
  %v667 = vpop.f32.mrf.mxu0
  %v668 = vadd.f32 %v654, %v667
  %669 = vdwg.mxu0
  %670 = vmatpush.bf16.msra.mxu0 %v507
  %671 = vmatpush.bf16.msra.mxu0 %v506
  %672 = vmatpush.bf16.msra.mxu0 %v505
  %673 = vmatpush.bf16.msra.mxu0 %v504
  %674 = vmatpush.bf16.msra.mxu0 %v503
  %675 = vmatpush.bf16.msra.mxu0 %v502
  %676 = vmatpush.bf16.msra.mxu0 %v501
  %677 = vmatpush.bf16.msra.mxu0 %v500
  %678 = vmatmul.bf16.gmra.mxu0 %v57
  %v679 = vpop.f32.mrf.mxu0
  %v680 = vadd.f32 %v666, %v679
  %v681 = vpop.f32.mrf.mxu0
  %v682 = vadd.f32 %v668, %v681
  %683 = vdwg.mxu0
  %v684 = vadd.f32 %v58, %v680
  %v685 = vadd.f32 %v59, %v682
  %vm686 = vcmask 261120
  %687 = vst.msk [vmem:[#allocation2] sm:$0xff] %vm686, %v684
  %688 = vst.msk [vmem:[#allocation2 + $0x8] sm:$0xff] %vm686, %v685
  // Predicated region
  $region34: #{encoder_classifier.1} parent=0 // pred_check
    %p689 = pneg %p27
  $region35: #{encoder_classifier.1} parent=0 // pred_check_branch
    %691 = sbr.rel (%p689) target = $region37
  $region36: #{encoder_classifier.1} parent=0 // pred_region
    %v692 = vld [vmem:[#allocation2] sm:$0xff]
    %v693 = vld [vmem:[#allocation2 + $0x8] sm:$0xff]
    %v694 = vld [vmem:[%s2] sm:$0x1]
    %v696 = vperm.slane %v694, 0
    %v698 = vadd.f32 %v692, %v696
    %v699 = vadd.f32 %v693, %v696
    %vm700 = vcmp.gt.f32.partialorder %v698, 0.0
    %vm701 = vcmp.gt.f32.partialorder %v699, 0.0
    %v702 = vmul.f32 %v698, 0.01
    %v703 = vmul.f32 %v699, 0.01
    %v704 = vsel %vm700, %v698, %v702
    %v705 = vsel %vm701, %v699, %v703
    %v706 = vpack.c.bf16 %v705, %v704
    %v707 = vld [vmem:[%s3] sm:$0xf]
    %v708 = vld [vmem:[%s3 + $0x4] sm:$0xf]
    %v709 = vld [vmem:[%s3 + $0x8] sm:$0xf]
    %v710 = vld [vmem:[%s3 + $0xc] sm:$0xf]
    %v711 = vld [vmem:[%s4] sm:$0x1]
    %v713 = vperm.slane %v711, 0
    %v719 = vunpack.c.l.b16 %v707
    %v720 = vunpack.c.l.b16 %v708
    %v721 = vunpack.c.l.b16 %v709
    %v722 = vunpack.c.l.b16 %v710
    %v723 = vpack.c.b16 %v720, %v719
    %v724 = vpack.c.b16 %v722, %v721
    %v728 = vsel %vm686, %v706, 0
    %730 = vmatpush.bf16.msra.mxu0 0
    %731 = vmatpush.bf16.msra.mxu0 0
    %732 = vmatpush.bf16.msra.mxu0 0
    %733 = vmatpush.bf16.msra.mxu0 0
    %734 = vmatpush.bf16.msra.mxu0 0
    %735 = vmatpush.bf16.msra.mxu0 0
    %736 = vmatpush.bf16.msra.mxu0 %v724
    %737 = vmatpush.bf16.msra.mxu0 %v723
    %738 = vmatmul.bf16.gmra.mxu0 %v728
    %v739 = vpop.f32.mrf.mxu0
    %v740 = vadd.f32 %v713, %v739
    %v741 = vpop.f32.mrf.mxu0
    %v742 = vadd.f32 %v713, %v741
    %743 = vdwg.mxu0
    %vm744 = vcmp.gt.f32.partialorder %v740, 0.0
    %vm745 = vcmp.gt.f32.partialorder %v742, 0.0
    %v746 = vmul.f32 %v740, 0.01
    %v747 = vmul.f32 %v742, 0.01
    %v748 = vsel %vm744, %v740, %v746
    %v749 = vsel %vm745, %v742, %v747
    %v750 = vpack.c.bf16 %v749, %v748
    %v751 = vld [vmem:[%s5] sm:$0xf]
    %v752 = vld [vmem:[%s5 + $0x4] sm:$0xf]
    %v753 = vld [vmem:[%s6] sm:$0x1]
    %v755 = vperm.slane %v753, 0
    %v759 = vunpack.c.l.b16 %v751
    %v760 = vunpack.c.l.b16 %v752
    %v761 = vpack.c.b16 %v760, %v759
    %vm763 = vcmask 130048
    %v765 = vsel %vm763, %v750, 0
    %767 = vmatpush.bf16.msra.mxu0 0
    %768 = vmatpush.bf16.msra.mxu0 0
    %769 = vmatpush.bf16.msra.mxu0 0
    %770 = vmatpush.bf16.msra.mxu0 0
    %771 = vmatpush.bf16.msra.mxu0 0
    %772 = vmatpush.bf16.msra.mxu0 0
    %773 = vmatpush.bf16.msra.mxu0 0
    %774 = vmatpush.bf16.msra.mxu0 %v761
    %775 = vmatmul.bf16.gmra.mxu0 %v765
    %v776 = vpop.f32.mrf.mxu0
    %v777 = vadd.f32 %v755, %v776
    %v778 = vpop.f32.mrf.mxu0
    %v779 = vadd.f32 %v755, %v778
    %780 = vdwg.mxu0
    %v781 = vlaneseq
    %v782 = vand.u32 %v781, 127
    %vm783 = vcmp.lt.s32.totalorder %v782, 2
    %v784 = vsel %vm783, %v777, -inf
    %v785 = vsel %vm783, %v779, -inf
    %786 = vmax.xlane.f32.xlu0 %v784
    %v787 = vpop.xlane.xlu0 %786
    %788 = vmax.xlane.f32.xlu0 %v785
    %v789 = vpop.xlane.xlu0 %788
    %v790 = vsub.f32 %v784, %v787
    %v791 = vsub.f32 %v785, %v789
    %v792 = vmul.f32 %v790, 1.442695
    %v793 = vpow.pop %v792
    %v794 = vmul.f32 %v791, 1.442695
    %v795 = vpow.pop %v794
    %796 = vadd.xlane.f32.xlu0 %v793
    %v797 = vpop.xlane.xlu0 %796
    %798 = vadd.xlane.f32.xlu0 %v795
    %v799 = vpop.xlane.xlu0 %798
    %v800 = vrcp.pop %v797
    %v801 = vmul.f32 %v797, %v800
    %v802 = vsub.f32 1.0, %v801
    %v803 = vmul.f32 %v800, %v802
    %v804 = vadd.f32 %v800, %v803
    %vm805 = vweird.f32 %v797
    %vm806 = vweird.f32 %v800
    %vm807 = vmor %vm805, %vm806
    %v808 = vsel %vm807, %v800, %v804
    %v809 = vand.u32 2147483647, %v797
    %vm810 = vcmp.eq.f32.partialorder %v809, 8.507059e+37
    %v811 = vand.u32 %v797, 2147483648
    %v812 = vor.u32 1.1754944e-38, %v811
    %v813 = vsel %vm810, %v812, %v808
    %v814 = vmul.f32 %v793, %v813
    %v815 = vrcp.pop %v799
    %v816 = vmul.f32 %v799, %v815
    %v817 = vsub.f32 1.0, %v816
    %v818 = vmul.f32 %v815, %v817
    %v819 = vadd.f32 %v815, %v818
    %vm820 = vweird.f32 %v799
    %vm821 = vweird.f32 %v815
    %vm822 = vmor %vm820, %vm821
    %v823 = vsel %vm822, %v815, %v819
    %v824 = vand.u32 2147483647, %v799
    %vm825 = vcmp.eq.f32.partialorder %v824, 8.507059e+37
    %v826 = vand.u32 %v799, 2147483648
    %v827 = vor.u32 1.1754944e-38, %v826
    %v828 = vsel %vm825, %v827, %v823
    %v829 = vmul.f32 %v795, %v828
    %v830 = vpack.c.bf16 %v814, %v814
    %v831 = vpack.c.bf16 %v829, %v829
    %832 = vst [vmem:[%s7] sm:$0xf] %v830
    %833 = vst [vmem:[%s7 + $0x4] sm:$0xf] %v831
  $region37: #{encoder_classifier.1} parent=0 // pred_fallthru
    _
  // Predicated region
  $region38: #{encoder_classifier.1} parent=0 // pred_check
    _
  $region39: #{encoder_classifier.1} parent=0 // pred_check_branch
    %835 = sbr.rel (0) target = $region41
  $region40: #{encoder_classifier.1} parent=0 // pred_region
    _
  $region41: #{encoder_classifier.1} parent=0 // pred_fallthru
    _
  // Predicated region
  $region42: #{encoder_classifier.1} parent=0 // pred_check
    _
  $region43: #{encoder_classifier.1} parent=0 // pred_check_branch
    %837 = sbr.rel (0) target = $region45
  $region44: #{encoder_classifier.1} parent=0 // pred_region
    _
  $region45: #{encoder_classifier.1} parent=0 // pred_fallthru
    _

</llo_original>
